<compile_context>
chip_gen: v7x
topology: tpu7x:2x2x1
jax: 0.10.0
libtpu: 0.0.40
codegen_flags: <defaults>
</compile_context>

<pallas_src>
import random

import numpy as np
import jax
import jax.numpy as jnp
from jax import lax
from jax.experimental import pallas as pl
from jax.experimental.pallas import tpu as pltpu

_EPS = 0.01


# -----------------------------------------------------------------------------
# Pallas kernels
# -----------------------------------------------------------------------------

def _rect_pair_swap_kernel(rect_ref, a_ref, b_ref, oa_ref, ob_ref):
    """Swap rectangle [x1:x2, y1:y2] between two (C, H, W) images.

    rect_ref is a scalar-prefetched SMEM (4,) int32 = (x1, x2, y1, y2); the
    rectangle indicator is built in-kernel from iota compares (no (H, W) mask
    array is ever DMA'd), and both swapped outputs come from one read of a, b.
    """
    x1, x2 = rect_ref[0], rect_ref[1]
    y1, y2 = rect_ref[2], rect_ref[3]
    _, H, W = a_ref.shape
    r = lax.broadcasted_iota(jnp.int32, (1, H, W), 1)
    c = lax.broadcasted_iota(jnp.int32, (1, H, W), 2)
    inside = (r >= x1) & (r < x2) & (c >= y1) & (c < y2)
    a = a_ref[...]
    b = b_ref[...]
    oa_ref[...] = jnp.where(inside, b, a)
    ob_ref[...] = jnp.where(inside, a, b)


@jax.jit
def rect_pair_swap(a, b, rect):
    """a, b: (C, H, W) float32; rect: (4,) int32. Returns the pair with the
    rectangle contents exchanged (single fused kernel launch)."""
    C, H, W = a.shape
    spec = pl.BlockSpec((C, H, W), lambda i, r: (0, 0, 0))
    return pl.pallas_call(
        _rect_pair_swap_kernel,
        grid_spec=pltpu.PrefetchScalarGridSpec(
            num_scalar_prefetch=1,
            grid=(1,),
            in_specs=[spec, spec],
            out_specs=[spec, spec],
        ),
        out_shape=(jax.ShapeDtypeStruct((C, H, W), a.dtype),
                   jax.ShapeDtypeStruct((C, H, W), b.dtype)),
    )(rect, a, b)


def _masked_pair_blend_kernel(m_ref, ay_ref, by_ref, am_ref, bm_ref,
                              oy_ref, om_ref):
    """o = b + (a - b) * m for an image pair AND its mask pair in one launch.

    m is (1, N) and broadcasts over channels; the wrapper flattens everything
    to a lane-dense (C, H*W) layout.
    """
    m = m_ref[...]
    ay, by = ay_ref[...], by_ref[...]
    am, bm = am_ref[...], bm_ref[...]
    oy_ref[...] = by + (ay - by) * m
    om_ref[...] = bm + (am - bm) * m


@jax.jit
def masked_pair_blend(ay, by, am, bm, m):
    """ay/by: (Ci, h, w); am/bm: (Cm, h, w); m: (h, w) in {0, 1}.
    Returns (ay*m + by*(1-m), am*m + bm*(1-m))."""
    Ci, h, w = ay.shape
    Cm = am.shape[0]
    n = h * w
    oy, om = pl.pallas_call(
        _masked_pair_blend_kernel,
        out_shape=(jax.ShapeDtypeStruct((Ci, n), ay.dtype),
                   jax.ShapeDtypeStruct((Cm, n), am.dtype)),
    )(m.astype(ay.dtype).reshape(1, n),
      ay.reshape(Ci, n), by.reshape(Ci, n),
      am.reshape(Cm, n), bm.reshape(Cm, n))
    return oy.reshape(Ci, h, w), om.reshape(Cm, h, w)


def _rect_touch_kernel(q_ref, m_ref, o_ref):
    """Overlap of one query rectangle with the non-background channels of one
    mask image: sum_{h,w in rect} sum_{c>=1} |mask[c, h, w]|.

    q_ref: SMEM (K, 5) int32 rows = (image_index, x1, x2, y1, y2). The grid
    runs over queries; the mask image block is selected by a data-dependent
    index_map reading the scalar-prefetched queries.
    """
    k = pl.program_id(0)
    x1, x2 = q_ref[k, 1], q_ref[k, 2]
    y1, y2 = q_ref[k, 3], q_ref[k, 4]
    m = m_ref[...]                                           # (C, H, W)
    _, H, W = m_ref.shape
    # channels 1..C-1: reduce all channels, subtract channel 0 (no [1:] copy).
    absum = jnp.sum(jnp.abs(m), axis=0, keepdims=True) - jnp.abs(m[0:1])
    r = lax.broadcasted_iota(jnp.int32, (1, H, W), 1)
    c = lax.broadcasted_iota(jnp.int32, (1, H, W), 2)
    box = (r >= x1) & (r < x2) & (c >= y1) & (c < y2)
    o_ref[...] = jnp.sum(jnp.where(box, absum, 0.0),
                         axis=(0, 1, 2), keepdims=True)


@jax.jit
def batched_rect_touch(masks, queries):
    """masks: (M, C, H, W) float32; queries: (K, 5) int32.
    Returns (K,) float32 overlap sums -- all candidate rectangles of a retry
    loop are scored with a single kernel launch / a single host sync."""
    M, C, H, W = masks.shape
    K = queries.shape[0]
    out = pl.pallas_call(
        _rect_touch_kernel,
        grid_spec=pltpu.PrefetchScalarGridSpec(
            num_scalar_prefetch=1,
            grid=(K,),
            in_specs=[pl.BlockSpec((None, C, H, W),
                                   lambda k, q: (q[k, 0], 0, 0, 0))],
            out_specs=pl.BlockSpec((1, 1, 1), lambda k, q: (k, 0, 0)),
        ),
        out_shape=jax.ShapeDtypeStruct((K, 1, 1), jnp.float32),
        compiler_params=pltpu.CompilerParams(
            dimension_semantics=("parallel",)),
    )(queries, masks)
    return out[:, 0, 0]


def _argmax_map_kernel(m_ref, o_ref):
    """Per-pixel argmax over the channel axis (first-max ties, like torch)."""
    C = m_ref.shape[0]
    best = m_ref[0:1, :]
    best_idx = jnp.zeros_like(best, dtype=jnp.int32)
    for ch in range(1, C):                       # static unroll; C is small
        v = m_ref[ch:ch + 1, :]
        gt = v > best
        best = jnp.where(gt, v, best)
        best_idx = jnp.where(gt, jnp.int32(ch), best_idx)
    o_ref[...] = best_idx


@jax.jit
def argmax_map(mask):
    """mask: (C, H, W) float32 -> (H, W) int32 channel argmax."""
    C, H, W = mask.shape
    out = pl.pallas_call(
        _argmax_map_kernel,
        out_shape=jax.ShapeDtypeStruct((1, H * W), jnp.int32),
    )(mask.reshape(C, H * W))
    return out.reshape(H, W)


def _area_overlap_kernel(area_ref, m_ref, o_ref):
    """sum(area * sum_{c>=1} |mask[c]|) -> (1, 1) device scalar."""
    m = m_ref[...]
    absum = jnp.sum(jnp.abs(m), axis=0, keepdims=True) - jnp.abs(m[0:1])
    o_ref[...] = jnp.sum(area_ref[...] * absum, axis=(0, 1), keepdims=True)


@jax.jit
def area_overlap_sum(area, mask):
    """area: (H, W); mask: (C, H, W). Returns a (1, 1) device scalar; the
    caller syncs exactly once at the decision point."""
    C, H, W = mask.shape
    return pl.pallas_call(
        _area_overlap_kernel,
        out_shape=jax.ShapeDtypeStruct((1, 1), jnp.float32),
    )(area.astype(jnp.float32).reshape(1, H * W),
      mask.astype(jnp.float32).reshape(C, H * W))


# -----------------------------------------------------------------------------
# Host-side glue mirroring the PyTorch reference
# -----------------------------------------------------------------------------

def trim_rectangle(x1, x2, y1, y2, sh):
    if x1 < 0:
        x2 += 0 - x1
        x1 += 0 - x1
    if x2 >= sh[2]:
        x1 -= x2 - sh[2] + 1
        x2 -= x2 - sh[2] + 1
    if y1 < 0:
        y2 += 0 - y1
        y1 += 0 - y1
    if y2 >= sh[3]:
        y1 -= y2 - sh[3] + 1
        y2 -= y2 - sh[3] + 1
    return (x1, x2, y1, y2)


def gen_rectangle(sh, w=-1, h=-1):
    x_c, y_c = (random.random(), random.random())
    x_s, y_s = (random.random() * 0.4 + 0.1, random.random() * 0.4 + 0.1)
    x_l, x_r = (x_c - x_s / 2, x_c + x_s / 2)
    y_l, y_r = (y_c - y_s / 2, y_c + y_s / 2)
    x1, x2 = (int(x_l * sh[2]), int(x_r * sh[2]))
    y1, y2 = (int(y_l * sh[3]), int(y_r * sh[3]))
    if w < 0 or h < 0:
        pass
    else:
        x2, y2 = (x1 + w, y1 + h)
    x1, x2, y1, y2 = trim_rectangle(x1, x2, y1, y2, sh)
    return (x1, x2, y1, y2)


def gen_nooverlap_rectangles(sh, mask_list):
    """Pick a pair of equal-size, non-overlapping rectangles that do not touch
    any object.  All 5 retry candidates are scored by ONE pallas_call and one
    host sync (instead of two syncs per candidate)."""
    x0_1, x0_2, y0_1, y0_2 = gen_rectangle(sh)
    B = len(mask_list)
    n_img = min(5, B)
    cands = [gen_rectangle(sh, w=x0_2 - x0_1, h=y0_2 - y0_1) for _ in range(5)]
    queries = np.zeros((10, 5), np.int32)       # img=0 + empty rect -> sum 0
    for i in range(5):
        if i < B:
            x1_1, x1_2, y1_1, y1_2 = cands[i]
            queries[2 * i] = (i, x0_1, x0_2, y0_1, y0_2)
            queries[2 * i + 1] = (i, x1_1, x1_2, y1_1, y1_2)
    stacked = jnp.stack(mask_list[:n_img])
    sums = np.asarray(batched_rect_touch(stacked, jnp.asarray(queries)))  # 1 sync
    for i in range(5):
        x1_1, x1_2, y1_1, y1_2 = cands[i]
        if not (x0_1 < x1_2 and x0_2 > x1_1 and (y0_1 < y1_2) and (y0_2 > y1_1)):
            # NOTE: the reference indexes mask[i:i+1] with the *retry* index i;
            # an out-of-range slice sums to 0 ("not touched") -- preserved here.
            if sums[2 * i] <= _EPS and sums[2 * i + 1] <= _EPS:
                return ([x0_1, x0_2, y0_1, y0_2], [x1_1, x1_2, y1_1, y1_2])
    return ([None, None, None, None], [None, None, None, None])


def generate_new_area(old_area, arg_mask):
    """old_area: (H, W) float {0,1}; arg_mask: (H, W) int32 channel-argmax of
    the same mask image (cached by the caller).

    The area sum + bounding box are fetched with one sync, and the 5 candidate
    placements are scored together with a second single sync.
    """
    H, W = old_area.shape
    rows = jnp.arange(H, dtype=jnp.int32)
    cols = jnp.arange(W, dtype=jnp.int32)
    present = old_area > 0.5
    row_any = jnp.any(present, axis=1)
    col_any = jnp.any(present, axis=0)
    stats = np.asarray(jnp.stack([
        jnp.sum(old_area),
        jnp.min(jnp.where(row_any, rows, H)).astype(jnp.float32),
        jnp.max(jnp.where(row_any, rows, -1)).astype(jnp.float32),
        jnp.min(jnp.where(col_any, cols, W)).astype(jnp.float32),
        jnp.max(jnp.where(col_any, cols, -1)).astype(jnp.float32),
    ]))                                                           # sync #1
    if stats[0] == 0.0:
        return (None, None, None, None, None, None)
    idx_x1, idx_x2 = int(stats[1]), int(stats[2])
    idx_y1, idx_y2 = int(stats[3]), int(stats[4])
    bh, bw = idx_x2 - idx_x1 + 1, idx_y2 - idx_y1 + 1
    cands = []
    for _ in range(5):
        new_x1 = random.randint(0, H - (idx_x2 - idx_x1) - 1)
        new_y1 = random.randint(0, W - (idx_y2 - idx_y1) - 1)
        cands.append((new_x1 - idx_x1, new_y1 - idx_y1))
    # TODO(synk): the shifted-window gather has data-dependent crop sizes; it
    # stays as plain-JAX glue (static-offset slices) rather than a Pallas kernel.
    src = lax.dynamic_slice(old_area, (idx_x1, idx_y1), (bh, bw))
    arg_f = arg_mask.astype(jnp.float32)
    checks = np.asarray(jnp.stack([
        jnp.sum(src * lax.dynamic_slice(arg_f, (idx_x1 + dx, idx_y1 + dy),
                                        (bh, bw)))
        for (dx, dy) in cands]))                                  # sync #2
    for (dx, dy), cs in zip(cands, checks):
        if cs < _EPS:
            return (dx, dy, idx_x1, idx_x2, idx_y1, idx_y2)
    return (None, None, None, None, None, None)


def dupplicate_object(yi, mi, old_area, new_area):
    """Blend the object's source window over its target window; the image and
    the mask blends are fused into one kernel launch."""
    x_diff, y_diff, x1, x2, y1_, y2_ = new_area
    src_r, src_c = slice(x1, x2 + 1), slice(y1_, y2_ + 1)
    tgt_r = slice(x1 + x_diff, x2 + x_diff + 1)
    tgt_c = slice(y1_ + y_diff, y2_ + y_diff + 1)
    m = old_area[src_r, src_c]
    y_new, m_new = masked_pair_blend(
        yi[:, src_r, src_c], yi[:, tgt_r, tgt_c],
        mi[:, src_r, src_c], mi[:, tgt_r, tgt_c], m)
    yi = yi.at[:, tgt_r, tgt_c].set(y_new)
    mi = mi.at[:, tgt_r, tgt_c].set(m_new)
    return yi, mi


def remove_object(yi, mi, old_area, new_area):
    # TODO(synk): pure shifted-region copy (no arithmetic) -> plain JAX scatter glue.
    x_diff, y_diff, x1, x2, y1_, y2_ = new_area
    yi = yi.at[:, x1:x2 + 1, y1_:y2_ + 1].set(
        yi[:, x1 + x_diff:x2 + x_diff + 1, y1_ + y_diff:y2_ + y_diff + 1])
    mi = mi.at[:, x1:x2 + 1, y1_:y2_ + 1].set(
        mi[:, x1 + x_diff:x2 + x_diff + 1, y1_ + y_diff:y2_ + y_diff + 1])
    return yi, mi


def nearest_resize(masks, H, W):
    # Nearest-neighbour interpolation (index glue; matches F.interpolate
    # mode='nearest').
    b, c, h, w = masks.shape
    ri = (jnp.arange(H) * h) // H
    ci = (jnp.arange(W) * w) // W
    return masks[:, :, ri[:, None], ci[None, :]]


# -----------------------------------------------------------------------------
# Layout_FA (JAX / Pallas version)
# -----------------------------------------------------------------------------

class Layout_FA:
    def __init__(self, no_mask, prob):
        self.no_mask = no_mask
        self.prob = prob
        self.ranges = (0.1, 0.3)

    def forward(self, y, masks):
        if not self.no_mask:
            mask_for_FA = nearest_resize(masks, y.shape[2], y.shape[3])
            ans = self.func_with_mask(y, mask_for_FA)
        else:
            ans = self.func_without_mask(y)
        return ans

    def func_without_mask(self, y):
        bs = y.shape[0]
        imgs = [y[i] for i in range(bs)]
        for i in range(0, bs - 1, 2):
            if random.random() < self.prob:
                rect = gen_rectangle(y.shape)
                rect_dev = jnp.asarray(rect, jnp.int32)
                imgs[i], imgs[i + 1] = rect_pair_swap(imgs[i], imgs[i + 1],
                                                      rect_dev)
        return jnp.stack(imgs)

    def func_with_mask(self, y, mask):
        sh = tuple(y.shape)
        ys = [y[i] for i in range(y.shape[0])]
        ms = [mask[i] for i in range(mask.shape[0])]
        ys, ms = self.mix_background(ys, ms, sh)
        ys, ms = self.swap(ys, ms, sh)
        ys, ms = self.move_objects(ys, ms)
        return jnp.stack(ys)

    def mix_background(self, ys, ms, sh):
        for i in range(len(ys)):
            if random.random() < self.prob:
                rect1, rect2 = gen_nooverlap_rectangles(sh, ms)
                if rect1[0] is not None:
                    x0_1, x0_2, y0_1, y0_2 = rect1
                    x1_1, x1_2, y1_1, y1_2 = rect2
                    # TODO(synk): same-image shifted-region copy is pure scatter glue.
                    ys[i] = ys[i].at[:, x0_1:x0_2, y0_1:y0_2].set(
                        ys[i][:, x1_1:x1_2, y1_1:y1_2])
                    ms[i] = ms[i].at[:, x0_1:x0_2, y0_1:y0_2].set(
                        ms[i][:, x1_1:x1_2, y1_1:y1_2])
        return ys, ms

    def swap(self, ys, ms, sh):
        B = len(ys)
        for i in range(0, B - 1, 2):
            if random.random() < self.prob:
                # Score all 5 candidate rectangles against mask[i] and
                # mask[i+1] with ONE kernel launch / ONE host sync.
                cands = [gen_rectangle(sh) for _ in range(5)]
                queries = np.zeros((10, 5), np.int32)
                for j, (x1, x2, y1_, y2_) in enumerate(cands):
                    queries[2 * j] = (0, x1, x2, y1_, y2_)
                    queries[2 * j + 1] = (1, x1, x2, y1_, y2_)
                stacked = jnp.stack([ms[i], ms[i + 1]])
                sums = np.asarray(
                    batched_rect_touch(stacked, jnp.asarray(queries)))  # 1 sync
                for j, (x1, x2, y1_, y2_) in enumerate(cands):
                    if sums[2 * j] > _EPS or sums[2 * j + 1] > _EPS:
                        continue
                    rect_dev = jnp.asarray((x1, x2, y1_, y2_), jnp.int32)
                    ys[i], ys[i + 1] = rect_pair_swap(ys[i], ys[i + 1], rect_dev)
                    ms[i], ms[i + 1] = rect_pair_swap(ms[i], ms[i + 1], rect_dev)
                    break
            if random.random() < self.prob:
                C_m = ms[i].shape[0]
                which_object = random.randint(0, C_m - 2) + 1
                old_area = (argmax_map(ms[i]) == which_object).astype(jnp.float32)
                cut = float(area_overlap_sum(old_area, ms[i + 1])[0, 0]) > _EPS
                if not cut:
                    ys[i + 1], ms[i + 1] = masked_pair_blend(
                        ys[i], ys[i + 1], ms[i], ms[i + 1], old_area)
        return ys, ms

    def move_objects(self, ys, ms):
        for i in range(len(ys)):
            C_m = ms[i].shape[0]
            num_changed_objects = random.randint(0, C_m - 2) + 1
            perm = list(range(C_m - 1))
            random.shuffle(perm)
            seq_classes = perm[:num_changed_objects]
            arg_i = None                    # cached channel-argmax of ms[i]
            for cur_class in seq_classes:
                if arg_i is None:
                    arg_i = argmax_map(ms[i])   # recompute only after a mutation
                old_area = (arg_i == cur_class + 1).astype(jnp.float32)
                new_area = generate_new_area(old_area, arg_i)
                if new_area[0] is None:
                    continue
                if random.random() < self.prob:
                    ys[i], ms[i] = dupplicate_object(ys[i], ms[i], old_area,
                                                     new_area)
                    arg_i = None
                if random.random() < self.prob:
                    ys[i], ms[i] = remove_object(ys[i], ms[i], old_area,
                                                 new_area)
                    arg_i = None
            # NOTE: the PyTorch reference returns inside the batch loop (only
            # the first image is ever processed); preserved on purpose.
            return ys, ms
        return ys, ms


# -----------------------------------------------------------------------------
# Demo
# -----------------------------------------------------------------------------

if __name__ == "__main__":
    random.seed(0)
    key = jax.random.PRNGKey(0)

    B, C_img, H, W = 2, 3, 16, 16
    C_m, h_m, w_m = 4, 8, 8

    y = jax.random.normal(key, (B, C_img, H, W), dtype=jnp.float32)

    # Deterministic synthetic segmentation masks: channel 0 = background,
    # channels 1..3 = object classes (small rectangular blobs).
    masks = jnp.zeros((B, C_m, h_m, w_m), jnp.float32)
    masks = masks.at[:, 0].set(1.0)
    masks = masks.at[0, 1, 1:3, 1:3].set(1.0).at[0, 0, 1:3, 1:3].set(0.0)
    masks = masks.at[1, 2, 5:7, 5:7].set(1.0).at[1, 0, 5:7, 5:7].set(0.0)

    # Mask-aware path
    model = Layout_FA(no_mask=False, prob=1.0)
    out_with_mask = model.forward(y, masks)
    jax.block_until_ready(out_with_mask)
    assert out_with_mask.shape == y.shape and out_with_mask.dtype == y.dtype

    # Mask-free path
    model2 = Layout_FA(no_mask=True, prob=1.0)
    out_no_mask = model2.forward(y, masks)
    jax.block_until_ready(out_no_mask)
    assert out_no_mask.shape == y.shape and out_no_mask.dtype == y.dtype

    print("KERNEL_OK")
</pallas_src>

<mosaic_0001>
module attributes {stable_mosaic.version = 11 : i64} {
  func.func @_rect_touch_kernel(%arg0: i32, %arg1: memref<10x5xi32, #tpu.memory_space<smem>>, %arg2: memref<1x4x16x16xf32, #tpu.memory_space<vmem>>, %arg3: memref<1x1x1xf32, #tpu.memory_space<vmem>>) attributes {dimension_semantics = [#tpu.dimension_semantics<parallel>], iteration_bounds = array<i64: 10>, scalar_prefetch = 1 : i64, scratch_operands = 0 : i64, tpu.core_type = #tpu.core_type<tc>, window_params = [{transform_indices = @transform_0, window_bounds = array<i64: 1, 4, 16, 16>}, {transform_indices = @transform_1, window_bounds = array<i64: 1, 1, 1>}]} {
    %0 = arith.index_cast %arg0 : i32 to index
    %c1 = arith.constant 1 : index
    %1 = memref.load %arg1[%0, %c1] : memref<10x5xi32, #tpu.memory_space<smem>>
    %2 = arith.index_cast %arg0 : i32 to index
    %c2 = arith.constant 2 : index
    %3 = memref.load %arg1[%2, %c2] : memref<10x5xi32, #tpu.memory_space<smem>>
    %4 = arith.index_cast %arg0 : i32 to index
    %c3 = arith.constant 3 : index
    %5 = memref.load %arg1[%4, %c3] : memref<10x5xi32, #tpu.memory_space<smem>>
    %6 = arith.index_cast %arg0 : i32 to index
    %c4 = arith.constant 4 : index
    %7 = memref.load %arg1[%6, %c4] : memref<10x5xi32, #tpu.memory_space<smem>>
    %c0 = arith.constant 0 : index
    %c0_0 = arith.constant 0 : index
    %c0_1 = arith.constant 0 : index
    %c0_2 = arith.constant 0 : index
    %8 = vector.load %arg2[%c0, %c0_0, %c0_1, %c0_2] : memref<1x4x16x16xf32, #tpu.memory_space<vmem>>, vector<1x4x16x16xf32>
    %9 = vector.shape_cast %8 : vector<1x4x16x16xf32> to vector<4x16x16xf32>
    %10 = math.absf %9 : vector<4x16x16xf32>
    %cst = arith.constant dense<0.000000e+00> : vector<16x16xf32>
    %11 = vector.multi_reduction <add>, %10, %cst [0] : vector<4x16x16xf32> to vector<16x16xf32>
    %12 = vector.shape_cast %11 : vector<16x16xf32> to vector<1x16x16xf32>
    %13 = vector.extract_strided_slice %9 {offsets = [0, 0, 0], sizes = [1, 16, 16], strides = [1, 1, 1]} : vector<4x16x16xf32> to vector<1x16x16xf32>
    %14 = math.absf %13 : vector<1x16x16xf32>
    %15 = arith.subf %12, %14 : vector<1x16x16xf32>
    %16 = tpu.iota {dimensions = array<i32: 1>} : vector<1x16x16xi32>
    %17 = tpu.iota {dimensions = array<i32: 2>} : vector<1x16x16xi32>
    %18 = vector.broadcast %1 : i32 to vector<1x16x16xi32>
    %19 = arith.cmpi sge, %16, %18 : vector<1x16x16xi32>
    %20 = vector.broadcast %3 : i32 to vector<1x16x16xi32>
    %21 = arith.cmpi slt, %16, %20 : vector<1x16x16xi32>
    %22 = arith.andi %19, %21 : vector<1x16x16xi1>
    %23 = vector.broadcast %5 : i32 to vector<1x16x16xi32>
    %24 = arith.cmpi sge, %17, %23 : vector<1x16x16xi32>
    %25 = arith.andi %22, %24 : vector<1x16x16xi1>
    %26 = vector.broadcast %7 : i32 to vector<1x16x16xi32>
    %27 = arith.cmpi slt, %17, %26 : vector<1x16x16xi32>
    %28 = arith.andi %25, %27 : vector<1x16x16xi1>
    %cst_3 = arith.constant 0.000000e+00 : f32
    %29 = vector.broadcast %cst_3 : f32 to vector<1x16x16xf32>
    %30 = arith.select %28, %15, %29 : vector<1x16x16xi1>, vector<1x16x16xf32>
    %31 = vector.shape_cast %30 : vector<1x16x16xf32> to vector<1x1x16x16xf32>
    %cst_4 = arith.constant dense<0.000000e+00> : vector<1xf32>
    %32 = vector.multi_reduction <add>, %31, %cst_4 [1, 2, 3] : vector<1x1x16x16xf32> to vector<1xf32>
    %33 = vector.shape_cast %32 : vector<1xf32> to vector<1x1x1x1xf32>
    %34 = vector.extract %33[0, 0, 0, 0] : f32 from vector<1x1x1x1xf32>
    %35 = vector.broadcast %34 : f32 to vector<1x1x1xf32>
    %c0_5 = arith.constant 0 : index
    %c0_6 = arith.constant 0 : index
    %c0_7 = arith.constant 0 : index
    %36 = vector.load %arg3[%c0_5, %c0_6, %c0_7] : memref<1x1x1xf32, #tpu.memory_space<vmem>>, vector<1x1x1xf32>
    tpu.vector_store %arg3[%c0_5, %c0_6, %c0_7], %35 {strides = array<i32>} : memref<1x1x1xf32, #tpu.memory_space<vmem>>, vector<1x1x1xf32>,
    return
  }
  func.func @transform_0(%arg0: i32, %arg1: memref<10x5xi32, #tpu.memory_space<smem>>) -> (i32, i32, i32, i32) {
    %0 = arith.index_cast %arg0 : i32 to index
    %c0 = arith.constant 0 : index
    %1 = memref.load %arg1[%0, %c0] : memref<10x5xi32, #tpu.memory_space<smem>>
    %c0_i32 = arith.constant 0 : i32
    %c0_i32_0 = arith.constant 0 : i32
    %c0_i32_1 = arith.constant 0 : i32
    %c0_i32_2 = arith.constant 0 : i32
    return %1, %c0_i32, %c0_i32_0, %c0_i32_1 : i32, i32, i32, i32
  }
  func.func @transform_1(%arg0: i32, %arg1: memref<10x5xi32, #tpu.memory_space<smem>>) -> (i32, i32, i32) {
    %c0_i32 = arith.constant 0 : i32
    %c0_i32_0 = arith.constant 0 : i32
    %c0_i32_1 = arith.constant 0 : i32
    return %arg0, %c0_i32, %c0_i32_0 : i32, i32, i32
  }
}

</mosaic_0001>

<llo_original>
// kernel: batched_rect_touch.1
$region0: #{batched_rect_touch.1}
  #allocation0 [shape = 'u32[]', space=smem, size = 0x4, offset = 0x4, fixed_abs, tag = 'smem constant byte address 0x4 - core index']
  #allocation1 [shape = 'u32[144,128]{1,0:T(1,128)}', space=vmem, size = 0x12000, scoped, tag = 'internal scratch']
  #allocation2 [shape = 's32[1]{0}', space=sflag, size = 0x4, scoped, tag = 'scoped memory for batched_rect_touch.1']
  #allocation3 [shape = 'u8[8192]{0}', space=smem, size = 0x2000, scoped, tag = 'prefetched SMEM operand 0']
  %s0 = inlined_call_operand.vmem [shape: s32[10,5], index: 0, kind: input, shape index: {}]
  %s1 = inlined_call_operand.hbm [shape: f32[2,4,16,16], index: 1, kind: input, shape index: {}]
  %s2 = inlined_call_operand.vmem [shape: f32[10,1,1], index: 2, kind: output, shape index: {}]
  %s3 = sld [smem:[#allocation0]]
  $region41: #{batched_rect_touch.1} parent=0
    _
  %s5 = ssub.s32 1, %s3
  %s6 = scalar_select 0, %s5, %s3
  %s7 = sshll.u32 %s0, 4
  %s8 = int_to_ptr.vmem [resolvable:$true] %s7
  %10 = dma.vmem_to_smem %s8, 256, [#allocation3], [#allocation2]
  %11 = dma.done [#allocation2], 256
  %12 = sfence
  $region1: #{batched_rect_touch.1} parent=0
    #allocation4 [shape = 'u8[65536]{0}', space=vmem, size = 0x10000, scoped, tag = 'input window, operand 1']
    #allocation5 [shape = 's32[2]{0}', space=sflag, size = 0x8, scoped, tag = 'scoped memory for batched_rect_touch.1']
    %13 = vsyncpa [#allocation5], 0
    %s14 = scalar_lea.sflag [#allocation5], 1
    %15 = vsyncpa %s14, 0
    loop: start=0, step=1, limit=12
    $region2: #{batched_rect_touch.1} parent=1 // loop_pre_header
      _
    $region3: #{batched_rect_touch.1} parent=1 // loop_header
      %s17 = sphi 0, %s21
      %p18 = scmp.ge.s32.totalorder %s17, 12
      %s31 = sphi 0, %s33
      %s34 = sphi 0, %s31
      %s35 = sphi 0, %s34
      %s51 = sphi 0, %s35
      %s57 = sphi 0, %s59
      %s60 = sphi 0, %s57
      %s61 = sphi 0, %s60
      %s77 = sphi 0, %s61
    $region4: #{batched_rect_touch.1} parent=1 // loop_header_branch
      %20 = sbr.rel (%p18) target = $region8
    $region5: #{batched_rect_touch.1} parent=1 // loop_body
      %s22 = ssub.s32 %s17, 1
      %s23 = ssub.s32 %s17, 2
      %s24 = sadd.s32 %s17, 1
      %s25 = smul.u32 %s17, 128
      %s26 = sld [smem:[#allocation3 + %s25]]
      %s27 = smul.u32 %s24, 128
      %s28 = sld [smem:[#allocation3 + %s27]]
      %s29 = ssub.s32 %s26, %s28
      %p30 = scmp.eq.s32.totalorder %s29, 0
      %s32 = sadd.s32 %s31, 1
      %s33 = scalar_select %p30, %s31, %s32
      %p36 = pneg %p30
      %p37 = scmp.eq.s32.totalorder %s17, 9
      %p38 = por %p36, %p37
      %p39 = scmp.ne.s32.totalorder %s31, %s34
      %p40 = scmp.eq.s32.totalorder %s17, 0
      %p41 = por %p39, %p40
      %p42 = scmp.ne.s32.totalorder %s31, %s34
      %p43 = scmp.eq.s32.totalorder %s22, 9
      %p44 = por %p42, %p43
      %p45 = scmp.ne.s32.totalorder %s34, %s35
      %p46 = scmp.eq.s32.totalorder %s22, 0
      %p47 = por %p45, %p46
      %p48 = scmp.ne.s32.totalorder %s34, %s35
      %p49 = scmp.eq.s32.totalorder %s23, 9
      %p50 = por %p48, %p49
      %p52 = scmp.ne.s32.totalorder %s35, %s51
      %p53 = scmp.eq.s32.totalorder %s23, 0
      %p54 = por %p52, %p53
      %s55 = ssub.s32 %s17, %s24
      %p56 = scmp.eq.s32.totalorder %s55, 0
      %s58 = sadd.s32 %s57, 1
      %s59 = scalar_select %p56, %s57, %s58
      %p62 = pneg %p56
      %p63 = scmp.eq.s32.totalorder %s17, 9
      %p64 = por %p62, %p63
      %p65 = scmp.ne.s32.totalorder %s57, %s60
      %p66 = scmp.eq.s32.totalorder %s17, 0
      %p67 = por %p65, %p66
      %p68 = scmp.ne.s32.totalorder %s57, %s60
      %p69 = scmp.eq.s32.totalorder %s22, 9
      %p70 = por %p68, %p69
      %p71 = scmp.ne.s32.totalorder %s60, %s61
      %p72 = scmp.eq.s32.totalorder %s22, 0
      %p73 = por %p71, %p72
      %p74 = scmp.ne.s32.totalorder %s60, %s61
      %p75 = scmp.eq.s32.totalorder %s23, 9
      %p76 = por %p74, %p75
      %p78 = scmp.ne.s32.totalorder %s61, %s77
      %p79 = scmp.eq.s32.totalorder %s23, 0
      %p80 = por %p78, %p79
      %p81 = scmp.le.s32.totalorder 1, %s17
      %p82 = scmp.lt.s32.totalorder %s17, 11
      %p83 = pnand %p81, %p82
      %p84 = pneg %p83
      // Predicated region
      $region9: #{batched_rect_touch.1} parent=5 // pred_check
        _
      $region10: #{batched_rect_touch.1} parent=5 // pred_check_branch
        %86 = sbr.rel (%p83) target = $region12
      $region11: #{batched_rect_touch.1} parent=5 // pred_region
        %s87 = ssub.s32 %s17, 1
      $region12: #{batched_rect_touch.1} parent=5 // pred_fallthru
        _
      %p88 = scmp.lt.s32.totalorder %s17, 10
      // Predicated region
      $region13: #{batched_rect_touch.1} parent=5 // pred_check
        %p89 = pneg %p88
      $region14: #{batched_rect_touch.1} parent=5 // pred_check_branch
        %91 = sbr.rel (%p89) target = $region16
      $region15: #{batched_rect_touch.1} parent=5 // pred_region
        // Predicated region
        $region17: #{batched_rect_touch.1} parent=15 // pred_check
          %p92 = pneg %p41
        $region18: #{batched_rect_touch.1} parent=15 // pred_check_branch
          %94 = sbr.rel (%p92) target = $region20
        $region19: #{batched_rect_touch.1} parent=15 // pred_region
          %s95 = sand.u32 %s31, 1
          %s96 = scalar_lea.sflag [#allocation5], %s95
          %s97 = sand.u32 %s31, 1
          %s98 = smul.addr %s97, 64
          %s99 = scalar_lea.vmem [#allocation4], %s98
          %s100 = smul.u32 %s17, 128
          %s101 = sld [smem:[#allocation3 + %s100]]
          %s103 = ssub.s32 1024, 1024
          %104 = vsyncadd %s96, %s103
          %s105 = smul.addr %s101, 8
          %s106 = smul.addr %s105, 128
          %s107 = scalar_lea.hbm %s1, %s106
          %s108 = sshll.u32 %s99, 4
          %s109 = int_to_ptr.vmem [resolvable:$true] %s108
          %114 = dma.hbm_to_vmem [thread:$0]  %s107, 1024, %s109, %s96, 128, 128, 8
        $region20: #{batched_rect_touch.1} parent=15 // pred_fallthru
          _
      $region16: #{batched_rect_touch.1} parent=5 // pred_fallthru
        _
      %p115 = scmp.le.s32.totalorder 1, %s17
      %p116 = scmp.lt.s32.totalorder %s17, 11
      %p117 = pnand %p115, %p116
      %p118 = pneg %p117
      // Predicated region
      $region21: #{batched_rect_touch.1} parent=5 // pred_check
        _
      $region22: #{batched_rect_touch.1} parent=5 // pred_check_branch
        %120 = sbr.rel (%p117) target = $region24
      $region23: #{batched_rect_touch.1} parent=5 // pred_region
        %s121 = ssub.s32 %s17, 1
        %s122 = sand.u32 %s34, 1
        %s123 = scalar_lea.sflag [#allocation5], %s122
        %s124 = sand.u32 %s34, 1
        %s125 = smul.addr %s124, 64
        %s126 = scalar_lea.vmem [#allocation4], %s125
        // Predicated region
        $region25: #{batched_rect_touch.1} parent=23 // pred_check
          %p127 = pneg %p47
        $region26: #{batched_rect_touch.1} parent=23 // pred_check_branch
          %129 = sbr.rel (%p127) target = $region28
        $region27: #{batched_rect_touch.1} parent=23 // pred_region
          %130 = dma.done %s123, 1024
        $region28: #{batched_rect_touch.1} parent=23 // pred_fallthru
          _
        %s131 = sand.u32 %s34, 1
        %s132 = scalar_lea.sflag [#allocation5], %s131
        %s133 = sand.u32 %s34, 1
        %s134 = smul.addr %s133, 64
        %s135 = scalar_lea.vmem [#allocation4], %s134
        %p136 = pneg %p47
        %p137 = pneg %p44
        %p138 = pneg %p73
        %p139 = pneg %p70
        %p140 = scmp.lt.s32.totalorder %s22, 9
        %s141 = scalar_select %p140, %s22, 9
        %s142 = scalar_lea.vmem %s2, %s141
        %s143 = smul.u32 %s22, 128
        %s144 = sld [smem:[#allocation3 + %s143]]
        %p145 = scmp.lt.s32.totalorder %s22, 9
        %s146 = scalar_select %p145, %s22, 9
        %s147 = scalar_lea.vmem %s2, %s146
        %s148 = smul.u32 %s22, 128
        %s149 = sadd.s32 %s148, 1
        %s150 = sld [smem:[#allocation3 + %s149]]
        %s151 = sadd.s32 %s148, 2
        %s152 = sld [smem:[#allocation3 + %s151]]
        %s153 = sadd.s32 %s148, 3
        %s154 = sld [smem:[#allocation3 + %s153]]
        %s155 = sadd.s32 %s148, 4
        %s156 = sld [smem:[#allocation3 + %s155]]
        %v157 = vld [vmem:[%s126] sm:$0xff]
        %v158 = vld [vmem:[%s126 + $0x8] sm:$0xff]
        %v159 = vld [vmem:[%s126 + $0x10] sm:$0xff]
        %v160 = vld [vmem:[%s126 + $0x18] sm:$0xff]
        %v161 = vld [vmem:[%s126 + $0x20] sm:$0xff]
        %v162 = vld [vmem:[%s126 + $0x28] sm:$0xff]
        %v163 = vld [vmem:[%s126 + $0x30] sm:$0xff]
        %v164 = vld [vmem:[%s126 + $0x38] sm:$0xff]
        %v165 = vand.u32 2147483647, %v157
        %v166 = vand.u32 2147483647, %v158
        %v167 = vand.u32 2147483647, %v159
        %v168 = vand.u32 2147483647, %v160
        %v169 = vand.u32 2147483647, %v161
        %v170 = vand.u32 2147483647, %v162
        %v171 = vand.u32 2147483647, %v163
        %v172 = vand.u32 2147483647, %v164
        %vm173 = vcmask 130048
        %v174 = vsel %vm173, %v165, 0.0
        %v175 = vsel %vm173, %v167, 0.0
        %v176 = vadd.f32 %v174, %v175
        %v177 = vsel %vm173, %v169, 0.0
        %v178 = vadd.f32 %v176, %v177
        %v179 = vsel %vm173, %v171, 0.0
        %v180 = vadd.f32 %v178, %v179
        %v181 = vsel %vm173, %v166, 0.0
        %v182 = vsel %vm173, %v168, 0.0
        %v183 = vadd.f32 %v181, %v182
        %v184 = vsel %vm173, %v170, 0.0
        %v185 = vadd.f32 %v183, %v184
        %v186 = vsel %vm173, %v172, 0.0
        %v187 = vadd.f32 %v185, %v186
        %v188 = vsub.f32 %v180, %v165
        %v189 = vsub.f32 %v187, %v166
        %v190 = vlaneseq
        %v191 = vshrl.u32 %v190, 7
        %v192 = vadd.s32 %v191, 8
        %v193 = vlaneseq
        %v194 = vand.u32 %v193, 127
        %v195 = vstv %s150
        %vm196 = vcmp.ge.s32.totalorder %v191, %v195
        %vm197 = vcmp.ge.s32.totalorder %v192, %v195
        %v198 = vstv %s152
        %vm199 = vcmp.lt.s32.totalorder %v191, %v198
        %vm200 = vcmp.lt.s32.totalorder %v192, %v198
        %vm201 = vmand %vm196, %vm199
        %vm202 = vmand %vm197, %vm200
        %v203 = vstv %s154
        %vm204 = vcmp.ge.s32.totalorder %v194, %v203
        %vm205 = vmand %vm201, %vm204
        %vm206 = vmand %vm202, %vm204
        %v207 = vstv %s156
        %vm208 = vcmp.lt.s32.totalorder %v194, %v207
        %vm209 = vmand %vm205, %vm208
        %vm210 = vmand %vm206, %vm208
        %v211 = vsel %vm209, %v188, 0.0
        %v212 = vsel %vm210, %v189, 0.0
        %v213 = vsel %vm173, %v211, 0.0
        %v214 = vsel %vm173, %v212, 0.0
        %v215 = vadd.f32 %v213, %v214
        %216 = vadd.xlane.f32.xlu0 %v215
        %v217 = vpop.xlane.xlu0 %216
        %v218 = vrot.slane %v217, 4
        %v219 = vadd.f32 %v217, %v218
        %v220 = vrot.slane %v219, 2
        %v221 = vadd.f32 %v219, %v220
        %v222 = vrot.slane %v221, 1
        %v223 = vadd.f32 %v221, %v222
        %s224 = vtos %v223
        %v225 = vstv %s224
        %vm226 = vcmask 0
        %227 = vst.msk [vmem:[%s147] sm:$0x1] %vm226, %v225
        %p228 = scmp.lt.s32.totalorder %s22, 9
        %s229 = scalar_select %p228, %s22, 9
        %s230 = scalar_lea.vmem %s2, %s229
        // Predicated region
        $region29: #{batched_rect_touch.1} parent=23 // pred_check
          %p231 = pneg %p70
        $region30: #{batched_rect_touch.1} parent=23 // pred_check_branch
          %233 = sbr.rel (%p231) target = $region32
        $region31: #{batched_rect_touch.1} parent=23 // pred_region
          _
        $region32: #{batched_rect_touch.1} parent=23 // pred_fallthru
          _
      $region24: #{batched_rect_touch.1} parent=5 // pred_fallthru
        _
      %p234 = scmp.le.s32.totalorder 2, %s17
      // Predicated region
      $region33: #{batched_rect_touch.1} parent=5 // pred_check
        %p235 = pneg %p234
      $region34: #{batched_rect_touch.1} parent=5 // pred_check_branch
        %237 = sbr.rel (%p235) target = $region36
      $region35: #{batched_rect_touch.1} parent=5 // pred_region
        %s238 = ssub.s32 %s17, 2
        // Predicated region
        $region37: #{batched_rect_touch.1} parent=35 // pred_check
          %p239 = pneg %p76
        $region38: #{batched_rect_touch.1} parent=35 // pred_check_branch
          %241 = sbr.rel (%p239) target = $region40
        $region39: #{batched_rect_touch.1} parent=35 // pred_region
          %p242 = scmp.lt.s32.totalorder %s23, 9
          %s243 = scalar_select %p242, %s23, 9
          %s244 = scalar_lea.vmem %s2, %s243
        $region40: #{batched_rect_touch.1} parent=35 // pred_fallthru
          _
      $region36: #{batched_rect_touch.1} parent=5 // pred_fallthru
        _
    $region6: #{batched_rect_touch.1} parent=1 // loop_footer
      %s21 = sadd.s32 1, %s17
    $region7: #{batched_rect_touch.1} parent=1 // loop_footer_branch
      %16 = sbr.rel target = $region3
    $region8: #{batched_rect_touch.1} parent=1 // loop_exit
      _
    %245 = vsyncpa [#allocation5], 1
    %s246 = scalar_lea.sflag [#allocation5], 1
    %247 = vsyncpa %s246, 1

</llo_original>
